<compile_context>
chip_gen: v7x
topology: tpu7x:2x2x1
jax: 0.10.0
libtpu: 0.0.40
codegen_flags: <defaults>
</compile_context>

<pallas_src>
import functools

import numpy as np

import jax
import jax.numpy as jnp
from jax.experimental import pallas as pl
from jax.experimental.pallas import tpu as pltpu

_LANE = 128


def _round_up(x, m):
    return ((x + m - 1) // m) * m


def _round_down(x, m):
    return (x // m) * m


def _sublane(dtype):
    return {4: 8, 2: 16, 1: 32}.get(jnp.dtype(dtype).itemsize, 8)


def _vmem_budget():
    """(working_budget_bytes, vmem_limit_cap_bytes) for this TPU generation."""
    try:
        cap = int(pltpu.get_tpu_info().vmem_capacity_bytes)
    except Exception:
        cap = 64 * 1024 * 1024  # conservative default if the query is unavailable
    if cap >= 100 * 1024 * 1024:                      # v5e / v6e: 128 MiB physical
        return 64 * 1024 * 1024, 100 * 1024 * 1024
    return 24 * 1024 * 1024, 32 * 1024 * 1024         # v7x: 64 MiB physical


# ---------------------------------------------------------------------------
# Kernels
# ---------------------------------------------------------------------------
def _pool_kernel(x_ref, wt_ref, o_ref):
    # (tm, V) @ (V, Pout) -> (tm, Pout); f32 accumulation on the MXU.
    o_ref[...] = jnp.dot(
        x_ref[...], wt_ref[...], preferred_element_type=jnp.float32
    ).astype(o_ref.dtype)


def _pool_kernel_ktiled(x_ref, wt_ref, o_ref, acc_ref, *, nk, tk, v, mask_tail):
    k = pl.program_id(1)

    @pl.when(k == 0)
    def _():
        acc_ref[...] = jnp.zeros_like(acc_ref)

    xv = x_ref[...]
    wv = wt_ref[...]
    if mask_tail:
        # Ragged last V tile: zero the out-of-bounds columns/rows so stale VMEM
        # (possibly NaN bit patterns) cannot leak into the accumulator.
        col = jax.lax.broadcasted_iota(jnp.int32, xv.shape, 1) + k * tk
        xv = jnp.where(col < v, xv, jnp.zeros_like(xv))
        row = jax.lax.broadcasted_iota(jnp.int32, wv.shape, 0) + k * tk
        wv = jnp.where(row < v, wv, jnp.zeros_like(wv))

    acc_ref[...] += jnp.dot(xv, wv, preferred_element_type=jnp.float32)

    @pl.when(k == nk - 1)
    def _():
        o_ref[...] = acc_ref[...].astype(o_ref.dtype)


# ---------------------------------------------------------------------------
# Host-side weight construction / preparation (hoisted, once per layer)
# ---------------------------------------------------------------------------
def make_pool_matrix(vertices, coarsening, dtype=jnp.float32):
    """Deterministic replica of GraphPool.make_matrix (host-side glue)."""
    m = np.zeros((len(coarsening), vertices), dtype=np.float32)
    for i, group in enumerate(coarsening):
        for j in group:
            m[i, j] = 1.0 / float(len(group))
    return jnp.asarray(m, dtype=dtype)


def prepare_pool_weight(pool_matrix, compute_dtype=None):
    """Once-per-layer weight preprocessing.

    Returns (wt, p): wt is (V, Pout) -- transposed, cast, and lane-padded only
    when the inflation is modest -- and p is the true number of pooled vertices.
    """
    p, _v = pool_matrix.shape
    dtype = jnp.dtype(compute_dtype) if compute_dtype is not None else pool_matrix.dtype
    wt = jnp.asarray(pool_matrix).T.astype(dtype)          # (V, P)
    p_pad = _round_up(p, _LANE)
    if p_pad != p and 2 * p_pad <= 3 * p:                   # <= 1.5x inflation only
        wt = jnp.pad(wt, ((0, 0), (0, p_pad - p)))
    return wt, p


# ---------------------------------------------------------------------------
# Forward pass
# ---------------------------------------------------------------------------
def graph_pool_prepared(x, wt, p, *, tm_cap=1024, force_pallas=False,
                        min_pallas_elements=1 << 18,
                        _force_ktiled=False, _tk=None):
    """x: (..., V), wt: (V, Pout) prepared weight -> (..., p).  F.linear semantics."""
    v, p_out = wt.shape
    assert x.shape[-1] == v, (x.shape, wt.shape)
    lead = x.shape[:-1]
    m = 1
    for d in lead:
        m *= int(d)

    out_dtype = x.dtype
    in_dtype = wt.dtype
    x2 = x.reshape(m, v)
    if x2.dtype != in_dtype:
        x2 = x2.astype(in_dtype)

    # Tiny problems: per-grid-step + custom-call overhead dominates; let XLA
    # fuse it with its neighbours instead.
    if not force_pallas and m * v < min_pallas_elements:
        out2 = jnp.dot(x2, wt, preferred_element_type=jnp.float32)
        if p_out != p:
            out2 = out2[:, :p]
        return out2.astype(out_dtype).reshape(*lead, p)

    esz_in = jnp.dtype(in_dtype).itemsize
    esz_out = jnp.dtype(out_dtype).itemsize
    sub = _sublane(in_dtype)
    budget, vmem_cap = _vmem_budget()

    cost = pl.CostEstimate(
        flops=2 * m * v * p_out,
        transcendentals=0,
        bytes_accessed=m * v * esz_in + v * p_out * esz_in + m * p_out * esz_out,
    )

    # ---- Resident-weight path: 1-D grid over M, weight stays in VMEM. ----
    wt_buf_bytes = 2 * v * p_out * esz_in          # conservative: assume 2 buffers
    per_row = 2 * v * esz_in + 2 * p_out * esz_out
    tm_fit = (budget - wt_buf_bytes) // per_row if budget > wt_buf_bytes else 0
    use_resident = (not _force_ktiled) and tm_fit >= min(256, _round_up(m, sub))

    if use_resident:
        if m < sub:
            tm = m                                  # full-extent block (legal)
        else:
            tm = min(tm_cap, tm_fit, _round_down(m, sub))
            for align in (256, _LANE):              # MXU-friendly tile heights
                if tm >= align:
                    tm = _round_down(tm, align)
                    break
            tm = max(tm, sub)
            # Give both v7x TensorCores work when M fits a single large tile.
            if pl.cdiv(m, tm) < 2 and m > 2 * 256:
                tm = max(_LANE, _round_up(pl.cdiv(m, 2), _LANE))
        num_m = pl.cdiv(m, tm)

        footprint = wt_buf_bytes + 2 * tm * v * esz_in + 2 * tm * p_out * esz_out
        vmem_limit = int(min(vmem_cap, max(2 * footprint, 8 * 1024 * 1024)))

        def _call(single_buffer_weight):
            wt_kwargs = {}
            if single_buffer_weight:
                # Constant index_map: one buffer is enough; second is dead VMEM.
                wt_kwargs["pipeline_mode"] = pl.Buffered(1)
            wt_spec = pl.BlockSpec((v, p_out), lambda i: (0, 0), **wt_kwargs)
            return pl.pallas_call(
                _pool_kernel,
                out_shape=jax.ShapeDtypeStruct((m, p_out), out_dtype),
                grid_spec=pltpu.PrefetchScalarGridSpec(
                    num_scalar_prefetch=0,
                    grid=(num_m,),
                    in_specs=[pl.BlockSpec((tm, v), lambda i: (i, 0)), wt_spec],
                    out_specs=pl.BlockSpec((tm, p_out), lambda i: (i, 0)),
                ),
                compiler_params=pltpu.CompilerParams(
                    dimension_semantics=("parallel",),
                    vmem_limit_bytes=vmem_limit,
                ),
                cost_estimate=cost,
            )(x2, wt)

        try:
            out2 = _call(True)
        except Exception:
            # pl.Buffered(1) not supported on this jax/Mosaic build: fall back
            # to the default (still non-refetched) weight buffering.
            out2 = _call(False)

        if p_out != p:
            out2 = out2[:, :p]
        return out2.reshape(*lead, p)

    # ---- K-tiled fallback: grid over (M, V), f32 VMEM accumulator. ----
    if m < sub:
        tm = m
    else:
        tm = min(tm_cap, _round_down(m, sub))
        for align in (256, _LANE):
            if tm >= align:
                tm = _round_down(tm, align)
                break
        tm = max(tm, sub)

    def _fixed(tm_):  # double-buffered out tile + f32 accumulator
        return tm_ * p_out * (2 * esz_out + 4)

    while tm > sub and _fixed(tm) + 2 * _LANE * (tm + p_out) * esz_in > budget:
        tm = max(sub, _round_down(tm // 2, sub))
        if tm == sub:
            break

    rem = budget - _fixed(tm)
    tk = _round_down(rem // max(2 * esz_in * (tm + p_out), 1), _LANE) if rem > 0 else 0
    if _tk is not None:
        tk = _tk
    if tk < _LANE:
        # Pathological shape (Pout alone overflows VMEM): hand it to XLA.
        out2 = jnp.dot(x2, wt, preferred_element_type=jnp.float32)
        if p_out != p:
            out2 = out2[:, :p]
        return out2.astype(out_dtype).reshape(*lead, p)
    tk = min(tk, _round_up(v, _LANE))

    num_m = pl.cdiv(m, tm)
    num_k = pl.cdiv(v, tk)
    mask_tail = (v % tk) != 0

    footprint = (2 * tm * tk * esz_in + 2 * tk * p_out * esz_in
                 + 2 * tm * p_out * esz_out + tm * p_out * 4)
    vmem_limit = int(min(vmem_cap, max(2 * footprint, 8 * 1024 * 1024)))

    kernel = functools.partial(_pool_kernel_ktiled, nk=num_k, tk=tk, v=v,
                               mask_tail=mask_tail)
    out2 = pl.pallas_call(
        kernel,
        out_shape=jax.ShapeDtypeStruct((m, p_out), out_dtype),
        grid_spec=pltpu.PrefetchScalarGridSpec(
            num_scalar_prefetch=0,
            grid=(num_m, num_k),
            in_specs=[
                pl.BlockSpec((tm, tk), lambda i, k: (i, k)),
                pl.BlockSpec((tk, p_out), lambda i, k: (k, 0)),
            ],
            out_specs=pl.BlockSpec((tm, p_out), lambda i, k: (i, 0)),
            scratch_shapes=[pltpu.VMEM((tm, p_out), jnp.float32)],
        ),
        compiler_params=pltpu.CompilerParams(
            dimension_semantics=("parallel", "arbitrary"),
            vmem_limit_bytes=vmem_limit,
        ),
        cost_estimate=cost,
    )(x2, wt)

    if p_out != p:
        out2 = out2[:, :p]
    return out2.reshape(*lead, p)


def graph_pool(x, pool_matrix, *, compute_dtype=None, **kwargs):
    """Convenience wrapper: x: (..., V), pool_matrix: (P, V) -> (..., P)."""
    cd = compute_dtype if compute_dtype is not None else x.dtype
    wt, p = prepare_pool_weight(pool_matrix, cd)
    return graph_pool_prepared(x, wt, p, **kwargs)


class GraphPool:
    """JAX/Pallas equivalent of the PyTorch GraphPool module.

    The pooling matrix is built and preprocessed once at construction
    (weight prep hoisted out of the forward pass).
    """

    def __init__(self, vertices, coarsening, *, compute_dtype=jnp.float32):
        self.vertices = vertices
        self.coarsening = coarsening
        self.pool_matrix = make_pool_matrix(vertices, coarsening, jnp.float32)
        self._wt, self._p = prepare_pool_weight(self.pool_matrix, compute_dtype)

    def __call__(self, x, **kwargs):
        return graph_pool_prepared(x, self._wt, self._p, **kwargs)


if __name__ == "__main__":
    key = jax.random.PRNGKey(0)

    # Small, module-consistent shapes.
    batch, channels, vertices = 2, 4, 16
    coarsening = [[2 * i, 2 * i + 1] for i in range(vertices // 2)]     # P = 8

    pool = GraphPool(vertices, coarsening)
    x = jax.random.normal(key, (batch, channels, vertices), jnp.float32)

    # force_pallas=True so the kernel is exercised even at demo size (the
    # default dispatch routes such tiny shapes to XLA).
    out = pool(x, force_pallas=True)
    out = jax.block_until_ready(out)

    ref = jnp.einsum("bcv,pv->bcp", x, pool.pool_matrix)
    assert out.shape == (batch, channels, len(coarsening))
    assert jnp.allclose(out, ref, atol=1e-5, rtol=1e-5)

    # Also exercise the K-tiled fallback (large-weight path) with a ragged V
    # tail so the in-kernel masking + accumulator init/finalize are covered.
    v2 = 320
    coarse2 = [list(range(5 * i, 5 * i + 5)) for i in range(v2 // 5)]   # P = 64
    pm2 = make_pool_matrix(v2, coarse2)
    x_big = jax.random.normal(jax.random.PRNGKey(1), (batch, channels, v2), jnp.float32)
    out2 = graph_pool(x_big, pm2, force_pallas=True, _force_ktiled=True, _tk=128)
    out2 = jax.block_until_ready(out2)
    ref2 = jnp.einsum("bcv,pv->bcp", x_big, pm2)
    assert out2.shape == (batch, channels, len(coarse2))
    assert jnp.allclose(out2, ref2, atol=1e-5, rtol=1e-5)

    print("KERNEL_OK")
</pallas_src>

<mosaic_0001>
module attributes {stable_mosaic.version = 11 : i64} {
  func.func @_pool_kernel(%arg0: i32, %arg1: memref<8x16xf32, #tpu.memory_space<vmem>>, %arg2: memref<16x8xf32, #tpu.memory_space<vmem>>, %arg3: memref<8x8xf32, #tpu.memory_space<vmem>>) attributes {dimension_semantics = [#tpu.dimension_semantics<parallel>], iteration_bounds = array<i64: 1>, scalar_prefetch = 0 : i64, scratch_operands = 0 : i64, tpu.core_type = #tpu.core_type<tc>, window_params = [{transform_indices = @transform_0, window_bounds = array<i64: 8, 16>}, {pipeline_mode = #tpu.pipeline_mode<synchronous>, transform_indices = @transform_1, window_bounds = array<i64: 16, 8>}, {transform_indices = @transform_2, window_bounds = array<i64: 8, 8>}]} {
    %c0 = arith.constant 0 : index
    %c0_0 = arith.constant 0 : index
    %0 = vector.load %arg1[%c0, %c0_0] : memref<8x16xf32, #tpu.memory_space<vmem>>, vector<8x16xf32>
    %c0_1 = arith.constant 0 : index
    %c0_2 = arith.constant 0 : index
    %1 = vector.load %arg2[%c0_1, %c0_2] : memref<16x8xf32, #tpu.memory_space<vmem>>, vector<16x8xf32>
    %cst = arith.constant dense<0.000000e+00> : vector<8x8xf32>
    %2 = tpu.matmul %0, %1, %cst {dimension_numbers = #tpu.dot_dimension_numbers<[1], [0], [0], [1], [0, 0, 1, 1], [], []>} : vector<8x16xf32>, vector<16x8xf32>, vector<8x8xf32> -> vector<8x8xf32>
    %c0_3 = arith.constant 0 : index
    %c0_4 = arith.constant 0 : index
    %3 = vector.load %arg3[%c0_3, %c0_4] : memref<8x8xf32, #tpu.memory_space<vmem>>, vector<8x8xf32>
    tpu.vector_store %arg3[%c0_3, %c0_4], %2 {strides = array<i32>} : memref<8x8xf32, #tpu.memory_space<vmem>>, vector<8x8xf32>,
    return
  }
  func.func @transform_0(%arg0: i32) -> (i32, i32) {
    %c0_i32 = arith.constant 0 : i32
    %c0_i32_0 = arith.constant 0 : i32
    return %arg0, %c0_i32 : i32, i32
  }
  func.func @transform_1(%arg0: i32) -> (i32, i32) {
    %c0_i32 = arith.constant 0 : i32
    %c0_i32_0 = arith.constant 0 : i32
    %c0_i32_1 = arith.constant 0 : i32
    return %c0_i32, %c0_i32_0 : i32, i32
  }
  func.func @transform_2(%arg0: i32) -> (i32, i32) {
    %c0_i32 = arith.constant 0 : i32
    %c0_i32_0 = arith.constant 0 : i32
    return %arg0, %c0_i32 : i32, i32
  }
}

module attributes {stable_mosaic.version = 11 : i64} {
  func.func @_pool_kernel(%arg0: i32, %arg1: memref<8x16xf32, #tpu.memory_space<vmem>>, %arg2: memref<16x8xf32, #tpu.memory_space<vmem>>, %arg3: memref<8x8xf32, #tpu.memory_space<vmem>>) attributes {dimension_semantics = [#tpu.dimension_semantics<parallel>], iteration_bounds = array<i64: 1>, scalar_prefetch = 0 : i64, scratch_operands = 0 : i64, tpu.core_type = #tpu.core_type<tc>, window_params = [{transform_indices = @transform_0, window_bounds = array<i64: 8, 16>}, {pipeline_mode = #tpu.pipeline_mode<synchronous>, transform_indices = @transform_1, window_bounds = array<i64: 16, 8>}, {transform_indices = @transform_2, window_bounds = array<i64: 8, 8>}]} {
    %c0 = arith.constant 0 : index
    %c0_0 = arith.constant 0 : index
    %0 = vector.load %arg1[%c0, %c0_0] : memref<8x16xf32, #tpu.memory_space<vmem>>, vector<8x16xf32>
    %c0_1 = arith.constant 0 : index
    %c0_2 = arith.constant 0 : index
    %1 = vector.load %arg2[%c0_1, %c0_2] : memref<16x8xf32, #tpu.memory_space<vmem>>, vector<16x8xf32>
    %cst = arith.constant dense<0.000000e+00> : vector<8x8xf32>
    %2 = tpu.matmul %0, %1, %cst {dimension_numbers = #tpu.dot_dimension_numbers<[1], [0], [0], [1], [0, 0, 1, 1], [], []>} : vector<8x16xf32>, vector<16x8xf32>, vector<8x8xf32> -> vector<8x8xf32>
    %c0_3 = arith.constant 0 : index
    %c0_4 = arith.constant 0 : index
    %3 = vector.load %arg3[%c0_3, %c0_4] : memref<8x8xf32, #tpu.memory_space<vmem>>, vector<8x8xf32>
    tpu.vector_store %arg3[%c0_3, %c0_4], %2 {strides = array<i32>} : memref<8x8xf32, #tpu.memory_space<vmem>>, vector<8x8xf32>,
    return
  }
  func.func @transform_0(%arg0: i32) -> (i32, i32) {
    %c0_i32 = arith.constant 0 : i32
    %c0_i32_0 = arith.constant 0 : i32
    return %arg0, %c0_i32 : i32, i32
  }
  func.func @transform_1(%arg0: i32) -> (i32, i32) {
    %c0_i32 = arith.constant 0 : i32
    %c0_i32_0 = arith.constant 0 : i32
    %c0_i32_1 = arith.constant 0 : i32
    return %c0_i32, %c0_i32_0 : i32, i32
  }
  func.func @transform_2(%arg0: i32) -> (i32, i32) {
    %c0_i32 = arith.constant 0 : i32
    %c0_i32_0 = arith.constant 0 : i32
    return %arg0, %c0_i32 : i32, i32
  }
}

</mosaic_0001>

<llo_original>
// kernel: tpu_custom_call.1
$region0: #{tpu_custom_call.1}
  #allocation0 [shape = 'u32[]', space=smem, size = 0x4, offset = 0x4, fixed_abs, tag = 'smem constant byte address 0x4 - core index']
  #allocation1 [shape = 'u32[144,128]{1,0:T(1,128)}', space=vmem, size = 0x12000, scoped, tag = 'internal scratch']
  %s0 = inlined_call_operand.vmem [shape: f32[8,16], index: 0, kind: input, shape index: {}]
  %s1 = inlined_call_operand.vmem [shape: f32[16,8], index: 1, kind: input, shape index: {}]
  %s2 = inlined_call_operand.hbm [shape: f32[8,8], index: 2, kind: output, shape index: {}]
  %s3 = sld [smem:[#allocation0]]
  $region18: #{tpu_custom_call.1} parent=0
    _
  %s5 = ssub.s32 1, %s3
  %s6 = scalar_select 0, %s5, %s3
  $region1: #{tpu_custom_call.1} parent=0
    #allocation2 [shape = 'u8[4096]{0}', space=vmem, size = 0x1000, scoped, tag = 'output window, operand 0, single buffered']
    #allocation3 [shape = 's32[1]{0}', space=sflag, size = 0x4, scoped, tag = 'scoped memory for tpu_custom_call.1']
    %7 = vsyncpa [#allocation3], 0
    // Predicated region
    $region2: #{tpu_custom_call.1} parent=1 // pred_check
      _
    $region3: #{tpu_custom_call.1} parent=1 // pred_check_branch
      %9 = sbr.rel (0) target = $region5
    $region4: #{tpu_custom_call.1} parent=1 // pred_region
      _
    $region5: #{tpu_custom_call.1} parent=1 // pred_fallthru
      _
    // Predicated region
    $region6: #{tpu_custom_call.1} parent=1 // pred_check
      _
    $region7: #{tpu_custom_call.1} parent=1 // pred_check_branch
      %11 = sbr.rel (0) target = $region9
    $region8: #{tpu_custom_call.1} parent=1 // pred_region
      _
    $region9: #{tpu_custom_call.1} parent=1 // pred_fallthru
      _
    %v12 = vld [vmem:[%s0] sm:$0xff]
    %v13 = vld [vmem:[%s1] sm:$0xff]
    %v14 = vld [vmem:[%s1 + $0x8] sm:$0xff]
    %vm15 = vcmask 130048
    %v17 = vsel %vm15, %v12, 0
    %19 = vmatprep.subr.mxu0 0.0
    %20 = vmatpush1.msra.mxu0 %v13
    %21 = vmatprep.subr.mxu0 0.0
    %22 = vmatpush1.msra.mxu0 %v14
    %23 = vmatprep.subr.mxu0 0.0
    %24 = vmatpush1.msra.mxu0 0.0
    %25 = vmatprep.subr.mxu0 0.0
    %26 = vmatpush1.msra.mxu0 0.0
    %27 = vmatprep.subr.mxu0 0.0
    %28 = vmatpush1.msra.mxu0 0.0
    %29 = vmatprep.subr.mxu0 0.0
    %30 = vmatpush1.msra.mxu0 0.0
    %31 = vmatprep.subr.mxu0 0.0
    %32 = vmatpush1.msra.mxu0 0.0
    %33 = vmatprep.subr.mxu0 0.0
    %34 = vmatpush1.msra.mxu0 0.0
    %35 = vmatprep.subr.mxu0 0.0
    %36 = vmatpush1.msra.mxu0 0.0
    %37 = vmatprep.subr.mxu0 0.0
    %38 = vmatpush1.msra.mxu0 0.0
    %39 = vmatprep.subr.mxu0 0.0
    %40 = vmatpush1.msra.mxu0 0.0
    %41 = vmatprep.subr.mxu0 0.0
    %42 = vmatpush1.msra.mxu0 0.0
    %43 = vmatprep.subr.mxu0 0.0
    %44 = vmatpush1.msra.mxu0 0.0
    %45 = vmatprep.subr.mxu0 0.0
    %46 = vmatpush1.msra.mxu0 0.0
    %47 = vmatprep.subr.mxu0 0.0
    %48 = vmatpush1.msra.mxu0 0.0
    %49 = vmatprep.subr.mxu0 0.0
    %50 = vmatpush1.msra.mxu0 0.0
    %51 = vmatprep.subr.mxu0 0.0
    %52 = vmatpush1.msra.mxu0 0.0
    %53 = vmatprep.subr.mxu0 0.0
    %54 = vmatpush1.msra.mxu0 0.0
    %55 = vmatprep.subr.mxu0 0.0
    %56 = vmatpush1.msra.mxu0 0.0
    %57 = vmatprep.subr.mxu0 0.0
    %58 = vmatpush1.msra.mxu0 0.0
    %59 = vmatprep.subr.mxu0 0.0
    %60 = vmatpush1.msra.mxu0 0.0
    %61 = vmatprep.subr.mxu0 0.0
    %62 = vmatpush1.msra.mxu0 0.0
    %63 = vmatprep.subr.mxu0 0.0
    %64 = vmatpush1.msra.mxu0 0.0
    %65 = vmatprep.subr.mxu0 0.0
    %66 = vmatpush1.msra.mxu0 0.0
    %67 = vmatprep.subr.mxu0 0.0
    %68 = vmatpush1.msra.mxu0 0.0
    %69 = vmatprep.subr.mxu0 0.0
    %70 = vmatpush1.msra.mxu0 0.0
    %71 = vmatprep.subr.mxu0 0.0
    %72 = vmatpush1.msra.mxu0 0.0
    %73 = vmatprep.subr.mxu0 0.0
    %74 = vmatpush1.msra.mxu0 0.0
    %75 = vmatprep.subr.mxu0 0.0
    %76 = vmatpush1.msra.mxu0 0.0
    %77 = vmatprep.subr.mxu0 0.0
    %78 = vmatpush1.msra.mxu0 0.0
    %79 = vmatprep.subr.mxu0 0.0
    %80 = vmatpush1.msra.mxu0 0.0
    %81 = vmatprep.subr.mxu0 0.0
    %82 = vmatpush1.msra.mxu0 0.0
    %83 = vmatprep.mubr.f32.mxu0 0.0
    %84 = vmatmul.mubr.f32.gmra.mrb[0].mxu0 %v17
    %v85 = vpop.f32.mrb[0].mxu0
    %v86 = vadd.f32 0.0, %v85
    %v87 = vpop.f32.mrb[0].mxu0
    %88 = vdwg.mxu0
    %vm89 = vcmask 64512
    %90 = vst.msk [vmem:[#allocation2] sm:$0xff] %vm89, %v86
    // Predicated region
    $region10: #{tpu_custom_call.1} parent=1 // pred_check
      _
    $region11: #{tpu_custom_call.1} parent=1 // pred_check_branch
      %92 = sbr.rel (0) target = $region13
    $region12: #{tpu_custom_call.1} parent=1 // pred_region
      %s94 = ssub.s32 128, 128
      %95 = vsyncadd [#allocation3], %s94
      %s97 = sshll.u32 [#allocation2], 4
      %s98 = int_to_ptr.vmem [resolvable:$true] %s97
      %100 = dma.vmem_to_hbm [thread:$0]  %s98, 128, %s2, [#allocation3]
    $region13: #{tpu_custom_call.1} parent=1 // pred_fallthru
      _
    // Predicated region
    $region14: #{tpu_custom_call.1} parent=1 // pred_check
      _
    $region15: #{tpu_custom_call.1} parent=1 // pred_check_branch
      %102 = sbr.rel (0) target = $region17
    $region16: #{tpu_custom_call.1} parent=1 // pred_region
      %103 = dma.done [#allocation3], 128
    $region17: #{tpu_custom_call.1} parent=1 // pred_fallthru
      _
    %104 = vsyncpa [#allocation3], 1

// kernel: tpu_custom_call.1
$region0: #{tpu_custom_call.1}
  #allocation0 [shape = 'u32[]', space=smem, size = 0x4, offset = 0x4, fixed_abs, tag = 'smem constant byte address 0x4 - core index']
  #allocation1 [shape = 'u32[144,128]{1,0:T(1,128)}', space=vmem, size = 0x12000, scoped, tag = 'internal scratch']
  %s0 = inlined_call_operand.vmem [shape: f32[8,16], index: 0, kind: input, shape index: {}]
  %s1 = inlined_call_operand.vmem [shape: f32[16,8], index: 1, kind: input, shape index: {}]
  %s2 = inlined_call_operand.hbm [shape: f32[8,8], index: 2, kind: output, shape index: {}]
  %s3 = sld [smem:[#allocation0]]
  $region18: #{tpu_custom_call.1} parent=0
    _
  %s5 = ssub.s32 1, %s3
  %s6 = scalar_select 0, %s5, %s3
  $region1: #{tpu_custom_call.1} parent=0
    #allocation2 [shape = 'u8[4096]{0}', space=vmem, size = 0x1000, scoped, tag = 'output window, operand 0, single buffered']
    #allocation3 [shape = 's32[1]{0}', space=sflag, size = 0x4, scoped, tag = 'scoped memory for tpu_custom_call.1']
    %7 = vsyncpa [#allocation3], 0
    // Predicated region
    $region2: #{tpu_custom_call.1} parent=1 // pred_check
      _
    $region3: #{tpu_custom_call.1} parent=1 // pred_check_branch
      %9 = sbr.rel (0) target = $region5
    $region4: #{tpu_custom_call.1} parent=1 // pred_region
      _
    $region5: #{tpu_custom_call.1} parent=1 // pred_fallthru
      _
    // Predicated region
    $region6: #{tpu_custom_call.1} parent=1 // pred_check
      _
    $region7: #{tpu_custom_call.1} parent=1 // pred_check_branch
      %11 = sbr.rel (0) target = $region9
    $region8: #{tpu_custom_call.1} parent=1 // pred_region
      _
    $region9: #{tpu_custom_call.1} parent=1 // pred_fallthru
      _
    %v12 = vld [vmem:[%s0] sm:$0xff]
    %v13 = vld [vmem:[%s1] sm:$0xff]
    %v14 = vld [vmem:[%s1 + $0x8] sm:$0xff]
    %vm15 = vcmask 130048
    %v17 = vsel %vm15, %v12, 0
    %19 = vmatprep.subr.mxu0 0.0
    %20 = vmatpush1.msra.mxu0 %v13
    %21 = vmatprep.subr.mxu0 0.0
    %22 = vmatpush1.msra.mxu0 %v14
    %23 = vmatprep.subr.mxu0 0.0
    %24 = vmatpush1.msra.mxu0 0.0
    %25 = vmatprep.subr.mxu0 0.0
    %26 = vmatpush1.msra.mxu0 0.0
    %27 = vmatprep.subr.mxu0 0.0
    %28 = vmatpush1.msra.mxu0 0.0
    %29 = vmatprep.subr.mxu0 0.0
    %30 = vmatpush1.msra.mxu0 0.0
    %31 = vmatprep.subr.mxu0 0.0
    %32 = vmatpush1.msra.mxu0 0.0
    %33 = vmatprep.subr.mxu0 0.0
    %34 = vmatpush1.msra.mxu0 0.0
    %35 = vmatprep.subr.mxu0 0.0
    %36 = vmatpush1.msra.mxu0 0.0
    %37 = vmatprep.subr.mxu0 0.0
    %38 = vmatpush1.msra.mxu0 0.0
    %39 = vmatprep.subr.mxu0 0.0
    %40 = vmatpush1.msra.mxu0 0.0
    %41 = vmatprep.subr.mxu0 0.0
    %42 = vmatpush1.msra.mxu0 0.0
    %43 = vmatprep.subr.mxu0 0.0
    %44 = vmatpush1.msra.mxu0 0.0
    %45 = vmatprep.subr.mxu0 0.0
    %46 = vmatpush1.msra.mxu0 0.0
    %47 = vmatprep.subr.mxu0 0.0
    %48 = vmatpush1.msra.mxu0 0.0
    %49 = vmatprep.subr.mxu0 0.0
    %50 = vmatpush1.msra.mxu0 0.0
    %51 = vmatprep.subr.mxu0 0.0
    %52 = vmatpush1.msra.mxu0 0.0
    %53 = vmatprep.subr.mxu0 0.0
    %54 = vmatpush1.msra.mxu0 0.0
    %55 = vmatprep.subr.mxu0 0.0
    %56 = vmatpush1.msra.mxu0 0.0
    %57 = vmatprep.subr.mxu0 0.0
    %58 = vmatpush1.msra.mxu0 0.0
    %59 = vmatprep.subr.mxu0 0.0
    %60 = vmatpush1.msra.mxu0 0.0
    %61 = vmatprep.subr.mxu0 0.0
    %62 = vmatpush1.msra.mxu0 0.0
    %63 = vmatprep.subr.mxu0 0.0
    %64 = vmatpush1.msra.mxu0 0.0
    %65 = vmatprep.subr.mxu0 0.0
    %66 = vmatpush1.msra.mxu0 0.0
    %67 = vmatprep.subr.mxu0 0.0
    %68 = vmatpush1.msra.mxu0 0.0
    %69 = vmatprep.subr.mxu0 0.0
    %70 = vmatpush1.msra.mxu0 0.0
    %71 = vmatprep.subr.mxu0 0.0
    %72 = vmatpush1.msra.mxu0 0.0
    %73 = vmatprep.subr.mxu0 0.0
    %74 = vmatpush1.msra.mxu0 0.0
    %75 = vmatprep.subr.mxu0 0.0
    %76 = vmatpush1.msra.mxu0 0.0
    %77 = vmatprep.subr.mxu0 0.0
    %78 = vmatpush1.msra.mxu0 0.0
    %79 = vmatprep.subr.mxu0 0.0
    %80 = vmatpush1.msra.mxu0 0.0
    %81 = vmatprep.subr.mxu0 0.0
    %82 = vmatpush1.msra.mxu0 0.0
    %83 = vmatprep.mubr.f32.mxu0 0.0
    %84 = vmatmul.mubr.f32.gmra.mrb[0].mxu0 %v17
    %v85 = vpop.f32.mrb[0].mxu0
    %v86 = vadd.f32 0.0, %v85
    %v87 = vpop.f32.mrb[0].mxu0
    %88 = vdwg.mxu0
    %vm89 = vcmask 64512
    %90 = vst.msk [vmem:[#allocation2] sm:$0xff] %vm89, %v86
    // Predicated region
    $region10: #{tpu_custom_call.1} parent=1 // pred_check
      _
    $region11: #{tpu_custom_call.1} parent=1 // pred_check_branch
      %92 = sbr.rel (0) target = $region13
    $region12: #{tpu_custom_call.1} parent=1 // pred_region
      %s94 = ssub.s32 128, 128
      %95 = vsyncadd [#allocation3], %s94
      %s97 = sshll.u32 [#allocation2], 4
      %s98 = int_to_ptr.vmem [resolvable:$true] %s97
      %100 = dma.vmem_to_hbm [thread:$0]  %s98, 128, %s2, [#allocation3]
    $region13: #{tpu_custom_call.1} parent=1 // pred_fallthru
      _
    // Predicated region
    $region14: #{tpu_custom_call.1} parent=1 // pred_check
      _
    $region15: #{tpu_custom_call.1} parent=1 // pred_check_branch
      %102 = sbr.rel (0) target = $region17
    $region16: #{tpu_custom_call.1} parent=1 // pred_region
      %103 = dma.done [#allocation3], 128
    $region17: #{tpu_custom_call.1} parent=1 // pred_fallthru
      _
    %104 = vsyncpa [#allocation3], 1

</llo_original>
